<compile_context>
chip_gen: v7x
topology: tpu7x:2x2x1
jax: 0.10.0
libtpu: 0.0.40
codegen_flags: <defaults>
</compile_context>

<pallas_src>
import functools
import math

import jax
import jax.numpy as jnp
from jax.experimental import pallas as pl
from jax.experimental.pallas import tpu as pltpu

N_ATTR = 14  # fixed by the splitting rule in _build_scale_mode_embedding_tensor
SPLIT_SLICES = ((0, 3), (3, 6), (6, 7), (7, 11), (11, 14))

_TARGET_COLS = 11                        # 2 spatial + 4 angular + 5 continuous targets
_D2R = math.pi / 180.0
_MiB = 1024 * 1024


# ----------------------------------------------------------------------------
# Per-generation VMEM budgets
# ----------------------------------------------------------------------------
@functools.lru_cache(maxsize=1)
def _hw_config():
    """(block_budget_bytes, vmem_limit_bytes) chosen from the chip's VMEM capacity."""
    block, limit = 8 * _MiB, 32 * _MiB            # safe fallback (any generation)
    try:
        info = pltpu.get_tpu_info()
        cap = int(getattr(info, "vmem_capacity_bytes", 0) or 0)
        if cap >= 96 * _MiB:                      # v5e / v6e: 128 MiB physical VMEM
            block, limit = 16 * _MiB, 80 * _MiB
        elif cap >= 48 * _MiB:                    # v7x: 64 MiB per TensorCore
            block, limit = 12 * _MiB, 44 * _MiB
    except Exception:
        pass
    return block, limit


# ----------------------------------------------------------------------------
# Tiling helpers
# ----------------------------------------------------------------------------
def _largest_divisor_leq(n, cap, multiple_of=1):
    """Largest d dividing n with d <= cap and (d % multiple_of == 0 or d == n)."""
    n = int(n)
    cap = max(1, min(n, int(cap)))
    for d in range(cap, 0, -1):
        if n % d == 0 and (d % multiple_of == 0 or d == n):
            return d
    return n


def _pick_tiles_3d(b, s, nf, itemsize, budget):
    """(bt, st, nt) so one (bt, st, nt) block stays within `budget` bytes.

    Prefers full-lane (nt == nf) blocks; if even the minimal legal sublane tile
    would overshoot the budget (very large N*F), a lane-axis tile (multiple of
    128) is used instead of falling back to an over-budget block.
    """
    elem = int(itemsize)
    st = _largest_divisor_leq(s, max(1, budget // max(1, nf * elem)), multiple_of=8)
    nt = nf
    if st * nf * elem > budget:
        st = _largest_divisor_leq(s, 8, multiple_of=8)        # minimal legal sublane tile
        nt = _largest_divisor_leq(nf, max(1, budget // max(1, st * elem)),
                                  multiple_of=128)
        # TODO(synk): if nf has no 128-multiple divisor this still falls back to
        #   nt = nf; padding nf to a multiple of 128 would avoid the oversize block.
    bt = _largest_divisor_leq(b, max(1, budget // max(1, st * nt * elem)))
    return bt, st, nt


# ----------------------------------------------------------------------------
# NaN / Inf validation (_validate_tensor)
# ----------------------------------------------------------------------------
def _validate_kernel(x_ref, flag_ref):
    x = x_ref[...]
    # NaN: x != x ; Inf: |x| == inf. Kept as two explicit reductions (the
    # single-abs-max variant relies on NaN propagation through reduce_max,
    # which we do not assume). i32 reductions are the portable Mosaic path.
    nan_any = jnp.max((x != x).astype(jnp.int32))
    inf_any = jnp.max((jnp.abs(x) == jnp.inf).astype(jnp.int32))
    tile_flag = jnp.broadcast_to(nan_any + 2 * inf_any, flag_ref.shape)

    first = jnp.logical_and(pl.program_id(1) == 0, pl.program_id(2) == 0)

    @pl.when(first)
    def _():
        flag_ref[...] = jnp.zeros_like(flag_ref)

    # bitwise-OR accumulate across the (seq, lane-tile) reduction axes; the
    # flag block stays resident (same block index) so there is one HBM write
    # per batch tile instead of one 4 KiB broadcast tile per grid step.
    flag_ref[...] = flag_ref[...] | tile_flag


def validate_tensor(x):
    """Pallas NaN/Inf scan (semantics of MtsHGnn._validate_tensor).

    Returns (has_nan, has_inf) as int32 scalars in {0, 1}.
    """
    if not jnp.issubdtype(x.dtype, jnp.floating):
        zero = jnp.zeros((), jnp.int32)
        return zero, zero

    b, s = x.shape[0], x.shape[1]
    nf = math.prod(x.shape[2:]) if x.ndim > 2 else 1
    x3 = x.reshape(b, s, nf)                        # lane-dense view: N*F on lanes

    block_budget, vmem_limit = _hw_config()
    bt, st, nt = _pick_tiles_3d(b, s, nf, x.dtype.itemsize, block_budget)
    gb, gs, gn = b // bt, s // st, nf // nt
    block_bytes = bt * st * nt * x.dtype.itemsize
    vmem_limit = max(vmem_limit, 2 * block_bytes + 4 * _MiB)   # double-buffered input

    flags = pl.pallas_call(
        _validate_kernel,
        out_shape=jax.ShapeDtypeStruct((gb, 8, 128), jnp.int32),
        grid=(gb, gs, gn),
        in_specs=[pl.BlockSpec((bt, st, nt), lambda i, j, k: (i, j, k))],
        out_specs=pl.BlockSpec((1, 8, 128), lambda i, j, k: (i, 0, 0)),
        compiler_params=pltpu.CompilerParams(
            dimension_semantics=("parallel", "arbitrary", "arbitrary"),
            vmem_limit_bytes=vmem_limit),
    )(x3)
    has_nan = jnp.max(flags & 1).astype(jnp.int32)
    has_inf = jnp.max((flags >> 1) & 1).astype(jnp.int32)
    return has_nan, has_inf


def build_scale_mode_embedding(x):
    """_build_scale_mode_embedding_tensor + _validate_tensor.

    The 5-way attribute split is pure slicing with zero compute, so it is
    returned as XLA slice views that fuse into their consumers; only the
    NaN/Inf validation reads x through Pallas.
    """
    b, s, n, f = x.shape
    if n < N_ATTR:
        raise ValueError(
            f"Input tensor's third dimension (n={n}) is too small for the "
            f"specified splitting rule.")
    has_nan, has_inf = validate_tensor(x)
    # TODO(synk): if a materialized (B, S, N*F) slab is ever needed, fuse the
    #   validation into the kernel that actually consumes it (standalone
    #   copy+validate doubles HBM traffic for zero compute).
    splits = tuple(x[:, :, lo:hi, :] for lo, hi in SPLIT_SLICES)
    return splits, has_nan, has_inf


# ----------------------------------------------------------------------------
# Loss-target construction — one fused kernel, natural (B, S, F) layout
# ----------------------------------------------------------------------------
def _loss_targets_kernel(lab_ref, out_ref):
    lab = lab_ref[...].astype(jnp.float32)          # (bt, st, FL) — f32 compute
    fl = lab.shape[-1]
    d2r = jnp.float32(_D2R)
    pi = jnp.float32(math.pi)

    lon = lab[:, :, fl - 2:fl - 1] * d2r            # cols 0-1: spatial p_true (rad)
    lat = lab[:, :, fl - 3:fl - 2] * d2r
    cog_t = lab[:, :, 9:10] * d2r - pi              # cols 2-5: angular sin/cos targets
    hdg_t = lab[:, :, 10:11] * d2r - pi
    cont_a = lab[:, :, 1:4]                         # cols 6-10: continuous 1,2,3,7,8
    cont_b = lab[:, :, 7:9]

    tgt = jnp.concatenate(
        [lon, lat,
         jnp.sin(cog_t), jnp.cos(cog_t),
         jnp.sin(hdg_t), jnp.cos(hdg_t),
         cont_a, cont_b], axis=-1)                  # (bt, st, 11)
    out_ref[...] = tgt.astype(out_ref.dtype)


def compute_loss_targets(labels):
    """Loss targets from _calculate_{spatial,angular,continuous}_loss.

    Returns (p_true, cog_sin_cos, heading_sin_cos, x_true_continuous), each in
    the original (B, S, C) layout, sliced from one (B, S, 11) kernel output.
    No wrapper-side transposes; all math is done in f32 and cast on store.
    """
    b, s, fl = labels.shape
    if fl < _TARGET_COLS:
        raise ValueError(f"labels feature dim (f={fl}) must be >= {_TARGET_COLS}.")

    block_budget, vmem_limit = _hw_config()
    itemsize = labels.dtype.itemsize
    row_bytes = (fl + _TARGET_COLS) * itemsize      # input row + output row per seq step
    st = _largest_divisor_leq(s, max(1, block_budget // max(1, row_bytes)),
                              multiple_of=8)
    gs = s // st
    bt_cap = max(1, block_budget // max(1, st * row_bytes))
    if gs == 1 and b >= 2:
        bt_cap = min(bt_cap, max(1, b // 2))        # >= 2 grid steps (megacore / overlap)
    bt = _largest_divisor_leq(b, bt_cap)

    out = pl.pallas_call(
        _loss_targets_kernel,
        out_shape=jax.ShapeDtypeStruct((b, s, _TARGET_COLS), labels.dtype),
        grid=(b // bt, gs),
        in_specs=[pl.BlockSpec((bt, st, fl), lambda i, j: (i, j, 0))],
        out_specs=pl.BlockSpec((bt, st, _TARGET_COLS), lambda i, j: (i, j, 0)),
        compiler_params=pltpu.CompilerParams(
            dimension_semantics=("parallel", "parallel"),
            vmem_limit_bytes=vmem_limit),
    )(labels)

    p_true = out[:, :, 0:2]
    cog_sin_cos = out[:, :, 2:4]
    heading_sin_cos = out[:, :, 4:6]
    x_true = out[:, :, 6:11]
    return p_true, cog_sin_cos, heading_sin_cos, x_true


# ----------------------------------------------------------------------------
# Module wrapper
# ----------------------------------------------------------------------------
class MtsHGnnPallas:
    """Pallas front-end for the fully specified parts of MtsHGnn.forward."""

    def __init__(self, graph_mask_values=(4, 8), max_delta=350.0):
        self.graph_mask_values = tuple(graph_mask_values)
        self.max_delta = max_delta
        # TODO(synk): HeterogeneousAttributeEncoder, the temporal models
        #   (ESNModel / AttentionModel / AttentionScaleModel),
        #   CrossScaleDependencyMining, HeterogeneousAttributeDecoder and the
        #   loss / metric helpers (compute_spatio_loss, get_time_interval,
        #   compute_time_interval_loss, calculate_angle_mse_loss,
        #   compute_angle_cos_loss, compute_continuous_mse_loss,
        #   compute_discrete_loss, haversine_distance, ...) are not defined in
        #   the provided source, so their parameters/compute cannot be reproduced.

    def impute_missing_values_frontend(self, x):
        """x: encoder output, shape (B, S, 14, d_data_model)."""
        return build_scale_mode_embedding(x)

    def loss_targets(self, observed_labels):
        """observed_labels: (B, S, F_label) -> loss targets."""
        return compute_loss_targets(observed_labels)


# ----------------------------------------------------------------------------
# Smoke test
# ----------------------------------------------------------------------------
if __name__ == "__main__":
    key = jax.random.PRNGKey(0)
    b, s, n, f = 2, 8, 14, 32          # batch, seq, attributes, d_data_model
    f_label = 16                       # label feature width (>= 14 + lon/lat/time)
    kx, kl = jax.random.split(key)

    # stand-in for the (undefined) HeterogeneousAttributeEncoder output
    x = jax.random.normal(kx, (b, s, n, f), dtype=jnp.float32)
    observed_labels = jax.random.uniform(
        kl, (b, s, f_label), dtype=jnp.float32, minval=0.0, maxval=360.0)

    model = MtsHGnnPallas()

    splits, nan_flag, inf_flag = model.impute_missing_values_frontend(x)
    p_true, cog_sc, hdg_sc, x_cont = model.loss_targets(observed_labels)
    jax.block_until_ready((splits, nan_flag, inf_flag,
                           p_true, cog_sc, hdg_sc, x_cont))

    # ---- correctness checks against pure-JAX reference ----
    ref_splits = [x[:, :, lo:hi, :] for lo, hi in SPLIT_SLICES]
    for got, ref in zip(splits, ref_splits):
        assert got.shape == ref.shape
        assert jnp.array_equal(got, ref), "scale split mismatch"
    assert int(nan_flag) == 0 and int(inf_flag) == 0, "clean-input flags wrong"

    # NaN / Inf detection (semantics of _validate_tensor)
    x_bad = x.at[0, 1, 2, 3].set(jnp.nan).at[1, 2, 3, 4].set(jnp.inf)
    _, bad_nan, bad_inf = model.impute_missing_values_frontend(x_bad)
    assert int(bad_nan) == 1 and int(bad_inf) == 1, "NaN/Inf detection failed"

    x_nan_only = x.at[0, 0, 0, 0].set(jnp.nan)
    _, n1, i1 = model.impute_missing_values_frontend(x_nan_only)
    assert int(n1) == 1 and int(i1) == 0, "NaN-only detection failed"
    x_inf_only = x.at[1, 7, 13, 31].set(-jnp.inf)
    _, n2, i2 = model.impute_missing_values_frontend(x_inf_only)
    assert int(n2) == 0 and int(i2) == 1, "Inf-only detection failed"

    d2r = jnp.float32(jnp.pi / 180.0)
    ref_p_true = jnp.concatenate(
        [observed_labels[:, :, -2:-1] * d2r,
         observed_labels[:, :, -3:-2] * d2r], axis=-1)
    assert jnp.allclose(p_true, ref_p_true, atol=1e-5), "p_true mismatch"

    cog_t = observed_labels[:, :, 9:10] * d2r - jnp.pi
    ref_cog = jnp.concatenate([jnp.sin(cog_t), jnp.cos(cog_t)], axis=-1)
    assert jnp.allclose(cog_sc, ref_cog, atol=1e-5), "cog targets mismatch"

    hdg_t = observed_labels[:, :, 10:11] * d2r - jnp.pi
    ref_hdg = jnp.concatenate([jnp.sin(hdg_t), jnp.cos(hdg_t)], axis=-1)
    assert jnp.allclose(hdg_sc, ref_hdg, atol=1e-5), "heading targets mismatch"

    ref_cont = jnp.concatenate(
        [observed_labels[:, :, 1:2], observed_labels[:, :, 2:3],
         observed_labels[:, :, 3:4], observed_labels[:, :, 7:8],
         observed_labels[:, :, 8:9]], axis=-1)
    assert jnp.allclose(x_cont, ref_cont, atol=1e-6), "continuous targets mismatch"

    print("KERNEL_OK")
</pallas_src>

<mosaic_0001>
module attributes {stable_mosaic.version = 11 : i64} {
  func.func @_validate_kernel(%arg0: i32, %arg1: i32, %arg2: i32, %arg3: memref<2x8x448xf32, #tpu.memory_space<vmem>>, %arg4: memref<1x8x128xi32, #tpu.memory_space<vmem>>) attributes {dimension_semantics = [#tpu.dimension_semantics<parallel>, #tpu.dimension_semantics<arbitrary>, #tpu.dimension_semantics<arbitrary>], iteration_bounds = array<i64: 1, 1, 1>, scalar_prefetch = 0 : i64, scratch_operands = 0 : i64, tpu.core_type = #tpu.core_type<tc>, window_params = [{transform_indices = @transform_0, window_bounds = array<i64: 2, 8, 448>}, {transform_indices = @transform_1, window_bounds = array<i64: 1, 8, 128>}]} {
    %c0 = arith.constant 0 : index
    %c0_0 = arith.constant 0 : index
    %c0_1 = arith.constant 0 : index
    %0 = vector.load %arg3[%c0, %c0_0, %c0_1] : memref<2x8x448xf32, #tpu.memory_space<vmem>>, vector<2x8x448xf32>
    %1 = arith.cmpf one, %0, %0 : vector<2x8x448xf32>
    %2 = arith.extui %1 : vector<2x8x448xi1> to vector<2x8x448xi32>
    %3 = vector.shape_cast %2 : vector<2x8x448xi32> to vector<1x2x8x448xi32>
    %cst = arith.constant dense<-2147483648> : vector<1xi32>
    %4 = vector.multi_reduction <maxsi>, %3, %cst [1, 2, 3] : vector<1x2x8x448xi32> to vector<1xi32>
    %5 = vector.shape_cast %4 : vector<1xi32> to vector<1x1x1x1xi32>
    %6 = vector.extract %5[0, 0, 0, 0] : i32 from vector<1x1x1x1xi32>
    %7 = math.absf %0 : vector<2x8x448xf32>
    %cst_2 = arith.constant 0x7F800000 : f32
    %8 = vector.broadcast %cst_2 : f32 to vector<2x8x448xf32>
    %9 = arith.cmpf oeq, %7, %8 : vector<2x8x448xf32>
    %10 = arith.extui %9 : vector<2x8x448xi1> to vector<2x8x448xi32>
    %11 = vector.shape_cast %10 : vector<2x8x448xi32> to vector<1x2x8x448xi32>
    %cst_3 = arith.constant dense<-2147483648> : vector<1xi32>
    %12 = vector.multi_reduction <maxsi>, %11, %cst_3 [1, 2, 3] : vector<1x2x8x448xi32> to vector<1xi32>
    %13 = vector.shape_cast %12 : vector<1xi32> to vector<1x1x1x1xi32>
    %14 = vector.extract %13[0, 0, 0, 0] : i32 from vector<1x1x1x1xi32>
    %c2_i32 = arith.constant 2 : i32
    %15 = arith.muli %c2_i32, %14 : i32
    %16 = arith.addi %6, %15 : i32
    %17 = vector.broadcast %16 : i32 to vector<1x8x128xi32>
    %c0_i32 = arith.constant 0 : i32
    %18 = arith.cmpi eq, %arg1, %c0_i32 : i32
    %c0_i32_4 = arith.constant 0 : i32
    %19 = arith.cmpi eq, %arg2, %c0_i32_4 : i32
    %20 = arith.andi %18, %19 : i1
    %21 = arith.extui %20 : i1 to i32
    %c0_i32_5 = arith.constant 0 : i32
    %22 = arith.cmpi ne, %21, %c0_i32_5 : i32
    scf.if %22 {
      %c0_i32_12 = arith.constant 0 : i32
      %26 = vector.broadcast %c0_i32_12 : i32 to vector<1x8x128xi32>
      %c0_13 = arith.constant 0 : index
      %c0_14 = arith.constant 0 : index
      %c0_15 = arith.constant 0 : index
      %27 = vector.load %arg4[%c0_13, %c0_14, %c0_15] : memref<1x8x128xi32, #tpu.memory_space<vmem>>, vector<1x8x128xi32>
      tpu.vector_store %arg4[%c0_13, %c0_14, %c0_15], %26 {strides = array<i32>} : memref<1x8x128xi32, #tpu.memory_space<vmem>>, vector<1x8x128xi32>,
    } else {
    }
    %c0_6 = arith.constant 0 : index
    %c0_7 = arith.constant 0 : index
    %c0_8 = arith.constant 0 : index
    %23 = vector.load %arg4[%c0_6, %c0_7, %c0_8] : memref<1x8x128xi32, #tpu.memory_space<vmem>>, vector<1x8x128xi32>
    %24 = arith.ori %23, %17 : vector<1x8x128xi32>
    %c0_9 = arith.constant 0 : index
    %c0_10 = arith.constant 0 : index
    %c0_11 = arith.constant 0 : index
    %25 = vector.load %arg4[%c0_9, %c0_10, %c0_11] : memref<1x8x128xi32, #tpu.memory_space<vmem>>, vector<1x8x128xi32>
    tpu.vector_store %arg4[%c0_9, %c0_10, %c0_11], %24 {strides = array<i32>} : memref<1x8x128xi32, #tpu.memory_space<vmem>>, vector<1x8x128xi32>,
    return
  }
  func.func @transform_0(%arg0: i32, %arg1: i32, %arg2: i32) -> (i32, i32, i32) {
    %c0_i32 = arith.constant 0 : i32
    return %arg0, %arg1, %arg2 : i32, i32, i32
  }
  func.func @transform_1(%arg0: i32, %arg1: i32, %arg2: i32) -> (i32, i32, i32) {
    %c0_i32 = arith.constant 0 : i32
    %c0_i32_0 = arith.constant 0 : i32
    %c0_i32_1 = arith.constant 0 : i32
    return %arg0, %c0_i32, %c0_i32_0 : i32, i32, i32
  }
}

</mosaic_0001>

<llo_original>
// kernel: tpu_custom_call.1
$region0: #{tpu_custom_call.1}
  #allocation0 [shape = 'u32[]', space=smem, size = 0x4, offset = 0x4, fixed_abs, tag = 'smem constant byte address 0x4 - core index']
  #allocation1 [shape = 'u32[144,128]{1,0:T(1,128)}', space=vmem, size = 0x12000, scoped, tag = 'internal scratch']
  %s0 = inlined_call_operand.hbm [shape: f32[2,8,448], index: 0, kind: input, shape index: {}]
  %s1 = inlined_call_operand.hbm [shape: s32[1,8,128], index: 1, kind: output, shape index: {}]
  %s2 = sld [smem:[#allocation0]]
  $region22: #{tpu_custom_call.1} parent=0
    _
  %s4 = ssub.s32 1, %s2
  %s5 = scalar_select 0, %s4, %s2
  $region1: #{tpu_custom_call.1} parent=0
    #allocation2 [shape = 'u8[32768]{0}', space=vmem, size = 0x8000, scoped, tag = 'input window, operand 0, single buffered']
    #allocation3 [shape = 's32[1]{0}', space=sflag, size = 0x4, scoped, tag = 'scoped memory for tpu_custom_call.1']
    #allocation4 [shape = 's32[1]{0}', space=sflag, size = 0x4, scoped, tag = 'scoped memory for tpu_custom_call.1']
    #allocation5 [shape = 'u8[4096]{0}', space=vmem, size = 0x1000, scoped, tag = 'output window, operand 0, single buffered']
    %6 = vsyncpa [#allocation3], 0
    %7 = vsyncpa [#allocation4], 0
    // Predicated region
    $region2: #{tpu_custom_call.1} parent=1 // pred_check
      _
    $region3: #{tpu_custom_call.1} parent=1 // pred_check_branch
      %9 = sbr.rel (0) target = $region5
    $region4: #{tpu_custom_call.1} parent=1 // pred_region
      %s11 = ssub.s32 1024, 1024
      %12 = vsyncadd [#allocation3], %s11
      %s13 = sshll.u32 [#allocation2], 4
      %s14 = int_to_ptr.vmem [resolvable:$true] %s13
      %19 = dma.hbm_to_vmem [thread:$0]  %s0, 1024, %s14, [#allocation3], 512, 512, 32
    $region5: #{tpu_custom_call.1} parent=1 // pred_fallthru
      _
    // Predicated region
    $region6: #{tpu_custom_call.1} parent=1 // pred_check
      _
    $region7: #{tpu_custom_call.1} parent=1 // pred_check_branch
      %21 = sbr.rel (0) target = $region9
    $region8: #{tpu_custom_call.1} parent=1 // pred_region
      %22 = dma.done [#allocation3], 1024
    $region9: #{tpu_custom_call.1} parent=1 // pred_fallthru
      _
    %v23 = vld [vmem:[#allocation2] sm:$0xff]
    %v24 = vld [vmem:[#allocation2 + $0x8] sm:$0xff]
    %v25 = vld [vmem:[#allocation2 + $0x10] sm:$0xff]
    %v26 = vld [vmem:[#allocation2 + $0x18] sm:$0xff]
    %v27 = vld [vmem:[#allocation2 + $0x20] sm:$0xff]
    %v28 = vld [vmem:[#allocation2 + $0x28] sm:$0xff]
    %v29 = vld [vmem:[#allocation2 + $0x30] sm:$0xff]
    %v30 = vld [vmem:[#allocation2 + $0x38] sm:$0xff]
    %vm31 = vcmp.ne.f32.partialorder %v23, %v23
    %vm32 = vcmp.ne.f32.partialorder %v24, %v24
    %vm33 = vcmp.ne.f32.partialorder %v25, %v25
    %vm34 = vcmp.ne.f32.partialorder %v26, %v26
    %vm35 = vcmp.ne.f32.partialorder %v27, %v27
    %vm36 = vcmp.ne.f32.partialorder %v28, %v28
    %vm37 = vcmp.ne.f32.partialorder %v29, %v29
    %vm38 = vcmp.ne.f32.partialorder %v30, %v30
    %v39 = vsel %vm31, 1, 0
    %v40 = vsel %vm32, 1, 0
    %v41 = vsel %vm33, 1, 0
    %v42 = vsel %vm34, 1, 0
    %v43 = vsel %vm35, 1, 0
    %v44 = vsel %vm36, 1, 0
    %v45 = vsel %vm37, 1, 0
    %v46 = vsel %vm38, 1, 0
    %vm47 = vcmask 523264
    %v48 = vsel %vm47, %v42, 2147483648
    %vm49 = vcmp.gt.s32.totalorder %v39, %v43
    %v50 = vsel %vm49, %v39, %v43
    %vm51 = vcmp.gt.s32.totalorder %v40, %v44
    %v52 = vsel %vm51, %v40, %v44
    %vm53 = vcmp.gt.s32.totalorder %v41, %v45
    %v54 = vsel %vm53, %v41, %v45
    %v55 = vsel %vm47, %v46, 2147483648
    %vm56 = vcmp.gt.s32.totalorder %v48, %v55
    %v57 = vsel %vm56, %v48, %v55
    %vm58 = vcmp.gt.s32.totalorder %v50, %v52
    %v59 = vsel %vm58, %v50, %v52
    %vm60 = vcmp.gt.s32.totalorder %v54, %v57
    %v61 = vsel %vm60, %v54, %v57
    %vm62 = vcmp.gt.s32.totalorder %v59, %v61
    %v63 = vsel %vm62, %v59, %v61
    %v64 = vand.u32 %v63, 65535
    %v65 = vshra.s32 %v63, 16
    %v66 = vcvt.s32.f32 %v64
    %v67 = vcvt.s32.f32 %v65
    %68 = vmax.xlane.f32.xlu0 %v67
    %v69 = vpop.xlane.xlu0 %68
    %vm70 = vcmp.eq.f32.partialorder %v67, %v69
    %v71 = vsel %vm70, %v66, -inf
    %72 = vmax.xlane.f32.xlu0 %v71
    %v73 = vpop.xlane.xlu0 %72
    %v74 = vcvt.f32.s32 %v73
    %v75 = vcvt.f32.s32 %v69
    %v76 = vshll.u32 %v75, 16
    %v77 = vadd.s32 %v76, %v74
    %v78 = vrot.slane %v77, 4
    %vm79 = vcmp.gt.s32.totalorder %v77, %v78
    %v80 = vsel %vm79, %v77, %v78
    %v81 = vrot.slane %v80, 2
    %vm82 = vcmp.gt.s32.totalorder %v80, %v81
    %v83 = vsel %vm82, %v80, %v81
    %v84 = vrot.slane %v83, 1
    %vm85 = vcmp.gt.s32.totalorder %v83, %v84
    %v86 = vsel %vm85, %v83, %v84
    %s87 = vtos %v86
    %v88 = vand.u32 2147483647, %v23
    %v89 = vand.u32 2147483647, %v24
    %v90 = vand.u32 2147483647, %v25
    %v91 = vand.u32 2147483647, %v26
    %v92 = vand.u32 2147483647, %v27
    %v93 = vand.u32 2147483647, %v28
    %v94 = vand.u32 2147483647, %v29
    %v95 = vand.u32 2147483647, %v30
    %vm96 = vcmp.eq.f32.partialorder %v88, inf
    %vm97 = vcmp.eq.f32.partialorder %v89, inf
    %vm98 = vcmp.eq.f32.partialorder %v90, inf
    %vm99 = vcmp.eq.f32.partialorder %v91, inf
    %vm100 = vcmp.eq.f32.partialorder %v92, inf
    %vm101 = vcmp.eq.f32.partialorder %v93, inf
    %vm102 = vcmp.eq.f32.partialorder %v94, inf
    %vm103 = vcmp.eq.f32.partialorder %v95, inf
    %v104 = vsel %vm96, 1, 0
    %v105 = vsel %vm97, 1, 0
    %v106 = vsel %vm98, 1, 0
    %v107 = vsel %vm99, 1, 0
    %v108 = vsel %vm100, 1, 0
    %v109 = vsel %vm101, 1, 0
    %v110 = vsel %vm102, 1, 0
    %v111 = vsel %vm103, 1, 0
    %v112 = vsel %vm47, %v107, 2147483648
    %vm113 = vcmp.gt.s32.totalorder %v104, %v108
    %v114 = vsel %vm113, %v104, %v108
    %vm115 = vcmp.gt.s32.totalorder %v105, %v109
    %v116 = vsel %vm115, %v105, %v109
    %vm117 = vcmp.gt.s32.totalorder %v106, %v110
    %v118 = vsel %vm117, %v106, %v110
    %v119 = vsel %vm47, %v111, 2147483648
    %vm120 = vcmp.gt.s32.totalorder %v112, %v119
    %v121 = vsel %vm120, %v112, %v119
    %vm122 = vcmp.gt.s32.totalorder %v114, %v116
    %v123 = vsel %vm122, %v114, %v116
    %vm124 = vcmp.gt.s32.totalorder %v118, %v121
    %v125 = vsel %vm124, %v118, %v121
    %vm126 = vcmp.gt.s32.totalorder %v123, %v125
    %v127 = vsel %vm126, %v123, %v125
    %v128 = vand.u32 %v127, 65535
    %v129 = vshra.s32 %v127, 16
    %v130 = vcvt.s32.f32 %v128
    %v131 = vcvt.s32.f32 %v129
    %132 = vmax.xlane.f32.xlu0 %v131
    %v133 = vpop.xlane.xlu0 %132
    %vm134 = vcmp.eq.f32.partialorder %v131, %v133
    %v135 = vsel %vm134, %v130, -inf
    %136 = vmax.xlane.f32.xlu0 %v135
    %v137 = vpop.xlane.xlu0 %136
    %v138 = vcvt.f32.s32 %v137
    %v139 = vcvt.f32.s32 %v133
    %v140 = vshll.u32 %v139, 16
    %v141 = vadd.s32 %v140, %v138
    %v142 = vrot.slane %v141, 4
    %vm143 = vcmp.gt.s32.totalorder %v141, %v142
    %v144 = vsel %vm143, %v141, %v142
    %v145 = vrot.slane %v144, 2
    %vm146 = vcmp.gt.s32.totalorder %v144, %v145
    %v147 = vsel %vm146, %v144, %v145
    %v148 = vrot.slane %v147, 1
    %vm149 = vcmp.gt.s32.totalorder %v147, %v148
    %v150 = vsel %vm149, %v147, %v148
    %s151 = vtos %v150
    %s152 = smul.u32 %s151, 2
    %s153 = sadd.s32 %s87, %s152
    %v154 = vstv %s153
    %p155 = scmp.eq.s32.totalorder 0, 0
    %p156 = scmp.eq.s32.totalorder 0, 0
    %p157 = pnand %p155, %p156
    %p158 = pneg %p157
    // Predicated region
    $region10: #{tpu_custom_call.1} parent=1 // pred_check
      _
    $region11: #{tpu_custom_call.1} parent=1 // pred_check_branch
      %160 = sbr.rel (%p157) target = $region13
    $region12: #{tpu_custom_call.1} parent=1 // pred_region
      %161 = vst [vmem:[#allocation5] sm:$0xff] 0
    $region13: #{tpu_custom_call.1} parent=1 // pred_fallthru
      _
    %v162 = vld [vmem:[#allocation5] sm:$0xff]
    %v163 = vor.u32 %v162, %v154
    %164 = vst [vmem:[#allocation5] sm:$0xff] %v163
    // Predicated region
    $region14: #{tpu_custom_call.1} parent=1 // pred_check
      _
    $region15: #{tpu_custom_call.1} parent=1 // pred_check_branch
      %166 = sbr.rel (0) target = $region17
    $region16: #{tpu_custom_call.1} parent=1 // pred_region
      %s168 = ssub.s32 128, 128
      %169 = vsyncadd [#allocation4], %s168
      %s171 = sshll.u32 [#allocation5], 4
      %s172 = int_to_ptr.vmem [resolvable:$true] %s171
      %174 = dma.vmem_to_hbm [thread:$0]  %s172, 128, %s1, [#allocation4]
    $region17: #{tpu_custom_call.1} parent=1 // pred_fallthru
      _
    // Predicated region
    $region18: #{tpu_custom_call.1} parent=1 // pred_check
      _
    $region19: #{tpu_custom_call.1} parent=1 // pred_check_branch
      %176 = sbr.rel (0) target = $region21
    $region20: #{tpu_custom_call.1} parent=1 // pred_region
      %177 = dma.done [#allocation4], 128
    $region21: #{tpu_custom_call.1} parent=1 // pred_fallthru
      _
    %178 = vsyncpa [#allocation3], 1
    %179 = vsyncpa [#allocation4], 1

</llo_original>
